<compile_context>
chip_gen: v7x
topology: tpu7x:2x2x1
jax: 0.10.0
libtpu: 0.0.40
codegen_flags: <defaults>
</compile_context>

<pallas_src>
import jax
import jax.numpy as jnp
from jax.experimental import pallas as pl
from jax.experimental.pallas import tpu as pltpu


# ---------------------------------------------------------------------------
# Kernel
# ---------------------------------------------------------------------------
def _llama_ff_kernel(x_ref, w13_ref, b13_ref, w2_ref, b2_ref, o_ref, acc_ref):
    j = pl.program_id(1)

    @pl.when(j == 0)
    def _init():
        acc_ref[...] = jnp.zeros_like(acc_ref)

    # Fused gate/up projection on the MXU: (tm, emb) @ (emb, 2*tf) -> f32 acc.
    # Operands stay in native dtype (bf16 fast path when weights are bf16).
    h = jnp.dot(x_ref[...], w13_ref[...], preferred_element_type=jnp.float32)
    h = h + b13_ref[...].astype(jnp.float32)

    tf = h.shape[-1] // 2
    gate = h[:, :tf]          # silu branch (w1 columns of this ff tile)
    up = h[:, tf:]            # linear branch (w3 columns of this ff tile)

    # SiLU + elementwise product in f32 on the VPU/EUP (f32 elementwise is the
    # fast combination on v5e, which has no bf16 VPU/EUP).
    act = (gate * jax.nn.sigmoid(gate)) * up

    # Down projection for this ff tile, accumulated across ff tiles.
    acc_ref[...] += jnp.dot(act.astype(w2_ref.dtype), w2_ref[...],
                            preferred_element_type=jnp.float32)

    @pl.when(j == pl.num_programs(1) - 1)
    def _finalize():
        # b2 is added exactly once, in the epilogue.
        o_ref[...] = (acc_ref[...] + b2_ref[...].astype(jnp.float32)).astype(o_ref.dtype)


# ---------------------------------------------------------------------------
# Wrapper
# ---------------------------------------------------------------------------
def _round_up(x, m):
    return ((x + m - 1) // m) * m


def _pick_ff_tile(ff, target=512, align=128):
    """Largest tile <= target that divides ff and is a multiple of `align`
    (or the full ff if ff is small)."""
    if ff <= target:
        return ff
    t = (target // align) * align
    while t >= align:
        if ff % t == 0:
            return t
        t -= align
    return ff


def llama_ff_block(x, w1, b1, w3, b3, w2, b2, *, tm_target=256, tf_target=512):
    """x: (batch, seq, emb). Weights pre-transposed: w1, w3: (emb, ff); w2: (ff, emb)."""
    batch, seq, emb = x.shape
    ff = w1.shape[1]
    m = batch * seq

    tf = _pick_ff_tile(ff, tf_target)
    nf = ff // tf
    tm = min(tm_target, _round_up(m, 8))
    m_pad = _round_up(m, tm)

    x2d = x.reshape(m, emb)
    if m_pad != m:
        x2d = jnp.pad(x2d, ((0, m_pad - m), (0, 0)))

    # Interleave w1/w3 per ff tile so the (emb, 2*tf) column block j is
    # [w1_tile_j | w3_tile_j]: one fused MXU matmul per grid step.
    w13 = jnp.stack([w1.reshape(emb, nf, tf), w3.reshape(emb, nf, tf)],
                    axis=2).reshape(emb, 2 * ff)
    b13 = jnp.stack([b1.reshape(nf, tf), b3.reshape(nf, tf)],
                    axis=1).reshape(1, 2 * ff)
    b2_2d = b2.reshape(1, emb)

    # VMEM footprint estimate (double-buffered tiles + f32 accumulator). Raise
    # the scoped limit accordingly but cap at 64 MiB (v7x physical VMEM/TC).
    xb = jnp.dtype(x.dtype).itemsize
    wb = jnp.dtype(w1.dtype).itemsize
    est = 2 * (tm * emb * xb          # x tile
               + emb * 2 * tf * wb    # fused w1|w3 tile
               + 2 * tf * wb          # fused b1|b3 tile
               + tf * emb * wb        # w2 tile
               + emb * wb             # b2
               + tm * emb * xb)       # output tile
    est += tm * emb * 4               # f32 accumulator
    vmem_limit = int(min(64 * 1024 * 1024, max(32 * 1024 * 1024, 2 * est)))

    grid = (m_pad // tm, nf)

    out2d = pl.pallas_call(
        _llama_ff_kernel,
        out_shape=jax.ShapeDtypeStruct((m_pad, emb), x.dtype),
        grid_spec=pltpu.PrefetchScalarGridSpec(
            num_scalar_prefetch=0,
            grid=grid,
            in_specs=[
                pl.BlockSpec((tm, emb), lambda i, j: (i, 0)),       # x tile
                pl.BlockSpec((emb, 2 * tf), lambda i, j: (0, j)),   # fused w1|w3 tile
                pl.BlockSpec((1, 2 * tf), lambda i, j: (0, j)),     # fused b1|b3 tile
                pl.BlockSpec((tf, emb), lambda i, j: (j, 0)),       # w2 tile
                pl.BlockSpec((1, emb), lambda i, j: (0, 0)),        # b2
            ],
            out_specs=pl.BlockSpec((tm, emb), lambda i, j: (i, 0)),
            scratch_shapes=[pltpu.VMEM((tm, emb), jnp.float32)],
        ),
        compiler_params=pltpu.CompilerParams(
            dimension_semantics=("parallel", "arbitrary"),
            vmem_limit_bytes=vmem_limit,
        ),
    )(x2d, w13, b13, w2, b2_2d)

    if m_pad != m:
        out2d = out2d[:m]
    return out2d.reshape(batch, seq, emb)


# ---------------------------------------------------------------------------
# Parameter init & pure-JAX reference
# ---------------------------------------------------------------------------
def init_params(key, emb_dim, ff_dim, dtype=jnp.float32):
    """Deterministic init mimicking nn.Linear's U(-1/sqrt(fan_in), 1/sqrt(fan_in)).
    Weights stored pre-transposed as (in_dim, out_dim)."""
    ks = jax.random.split(key, 6)
    lim1 = 1.0 / (emb_dim ** 0.5)   # w1, w3 fan_in = emb_dim
    lim2 = 1.0 / (ff_dim ** 0.5)    # w2 fan_in = ff_dim
    w1 = jax.random.uniform(ks[0], (emb_dim, ff_dim), dtype, -lim1, lim1)
    b1 = jax.random.uniform(ks[1], (ff_dim,), dtype, -lim1, lim1)
    w3 = jax.random.uniform(ks[2], (emb_dim, ff_dim), dtype, -lim1, lim1)
    b3 = jax.random.uniform(ks[3], (ff_dim,), dtype, -lim1, lim1)
    w2 = jax.random.uniform(ks[4], (ff_dim, emb_dim), dtype, -lim2, lim2)
    b2 = jax.random.uniform(ks[5], (emb_dim,), dtype, -lim2, lim2)
    return w1, b1, w3, b3, w2, b2


def reference_ff(x, w1, b1, w3, b3, w2, b2):
    hp = jax.lax.Precision.HIGHEST
    h1 = jnp.dot(x, w1, precision=hp) + b1
    gate = h1 * jax.nn.sigmoid(h1)
    h3 = jnp.dot(x, w3, precision=hp) + b3
    return jnp.dot(gate * h3, w2, precision=hp) + b2


# ---------------------------------------------------------------------------
# Test
# ---------------------------------------------------------------------------
if __name__ == "__main__":
    key = jax.random.PRNGKey(0)

    # Case 1: tiny shapes (single grid step, full-array blocks).
    batch, seq, emb_dim, ff_dim = 2, 8, 32, 64
    kx, kp, key = jax.random.split(key, 3)
    x = jax.random.normal(kx, (batch, seq, emb_dim), jnp.float32)
    params = init_params(kp, emb_dim, ff_dim)
    out = jax.block_until_ready(llama_ff_block(x, *params))
    ref = reference_ff(x, *params)
    assert out.shape == (batch, seq, emb_dim)
    assert jnp.allclose(out, ref, atol=2e-2, rtol=2e-2), "mismatch vs reference (tiny)"

    # Case 2: shapes that exercise the tiled (M, ff) grid and the accumulator.
    batch, seq, emb_dim, ff_dim = 2, 256, 256, 1024   # M=512 -> 2 M-tiles, 2 ff-tiles
    kx, kp = jax.random.split(key)
    x = jax.random.normal(kx, (batch, seq, emb_dim), jnp.float32)
    params = init_params(kp, emb_dim, ff_dim)
    out = jax.block_until_ready(llama_ff_block(x, *params))
    ref = reference_ff(x, *params)
    assert out.shape == (batch, seq, emb_dim)
    assert jnp.allclose(out, ref, atol=2e-2, rtol=2e-2), "mismatch vs reference (tiled)"

    print("KERNEL_OK")
</pallas_src>

<mosaic_0001>
module attributes {stable_mosaic.version = 11 : i64} {
  func.func @_llama_ff_kernel(%arg0: i32, %arg1: i32, %arg2: memref<16x32xf32, #tpu.memory_space<vmem>>, %arg3: memref<32x128xf32, #tpu.memory_space<vmem>>, %arg4: memref<1x128xf32, #tpu.memory_space<vmem>>, %arg5: memref<64x32xf32, #tpu.memory_space<vmem>>, %arg6: memref<1x32xf32, #tpu.memory_space<vmem>>, %arg7: memref<16x32xf32, #tpu.memory_space<vmem>>, %arg8: memref<16x32xf32, #tpu.memory_space<vmem>>) attributes {dimension_semantics = [#tpu.dimension_semantics<parallel>, #tpu.dimension_semantics<arbitrary>], iteration_bounds = array<i64: 1, 1>, scalar_prefetch = 0 : i64, scratch_operands = 1 : i64, tpu.core_type = #tpu.core_type<tc>, window_params = [{transform_indices = @transform_0, window_bounds = array<i64: 16, 32>}, {transform_indices = @transform_1, window_bounds = array<i64: 32, 128>}, {transform_indices = @transform_2, window_bounds = array<i64: 1, 128>}, {transform_indices = @transform_3, window_bounds = array<i64: 64, 32>}, {pipeline_mode = #tpu.pipeline_mode<synchronous>, transform_indices = @transform_4, window_bounds = array<i64: 1, 32>}, {transform_indices = @transform_5, window_bounds = array<i64: 16, 32>}]} {
    %c0_i32 = arith.constant 0 : i32
    %0 = arith.cmpi eq, %arg1, %c0_i32 : i32
    %1 = arith.extui %0 : i1 to i32
    %c0_i32_0 = arith.constant 0 : i32
    %2 = arith.cmpi ne, %1, %c0_i32_0 : i32
    scf.if %2 {
      %cst_16 = arith.constant 0.000000e+00 : f32
      %26 = vector.broadcast %cst_16 : f32 to vector<16x32xf32>
      %c0_17 = arith.constant 0 : index
      %c0_18 = arith.constant 0 : index
      %27 = vector.load %arg8[%c0_17, %c0_18] : memref<16x32xf32, #tpu.memory_space<vmem>>, vector<16x32xf32>
      tpu.vector_store %arg8[%c0_17, %c0_18], %26 {strides = array<i32>} : memref<16x32xf32, #tpu.memory_space<vmem>>, vector<16x32xf32>,
    } else {
    }
    %c0 = arith.constant 0 : index
    %c0_1 = arith.constant 0 : index
    %3 = vector.load %arg2[%c0, %c0_1] : memref<16x32xf32, #tpu.memory_space<vmem>>, vector<16x32xf32>
    %c0_2 = arith.constant 0 : index
    %c0_3 = arith.constant 0 : index
    %4 = vector.load %arg3[%c0_2, %c0_3] : memref<32x128xf32, #tpu.memory_space<vmem>>, vector<32x128xf32>
    %cst = arith.constant dense<0.000000e+00> : vector<16x128xf32>
    %5 = tpu.matmul %3, %4, %cst {dimension_numbers = #tpu.dot_dimension_numbers<[1], [0], [0], [1], [0, 0, 1, 1], [], []>} : vector<16x32xf32>, vector<32x128xf32>, vector<16x128xf32> -> vector<16x128xf32>
    %c0_4 = arith.constant 0 : index
    %c0_5 = arith.constant 0 : index
    %6 = vector.load %arg4[%c0_4, %c0_5] : memref<1x128xf32, #tpu.memory_space<vmem>>, vector<1x128xf32>
    %7 = vector.broadcast %6 : vector<1x128xf32> to vector<16x128xf32>
    %8 = arith.addf %5, %7 : vector<16x128xf32>
    %9 = vector.extract_strided_slice %8 {offsets = [0, 0], sizes = [16, 64], strides = [1, 1]} : vector<16x128xf32> to vector<16x64xf32>
    %10 = vector.extract_strided_slice %8 {offsets = [0, 64], sizes = [16, 64], strides = [1, 1]} : vector<16x128xf32> to vector<16x64xf32>
    %11 = arith.negf %9 : vector<16x64xf32>
    %12 = math.exp %11 : vector<16x64xf32>
    %cst_6 = arith.constant 1.000000e+00 : f32
    %13 = vector.broadcast %cst_6 : f32 to vector<16x64xf32>
    %14 = arith.addf %13, %12 : vector<16x64xf32>
    %15 = arith.divf %13, %14 : vector<16x64xf32>
    %16 = arith.mulf %9, %15 : vector<16x64xf32>
    %17 = arith.mulf %16, %10 : vector<16x64xf32>
    %c0_7 = arith.constant 0 : index
    %c0_8 = arith.constant 0 : index
    %18 = vector.load %arg8[%c0_7, %c0_8] : memref<16x32xf32, #tpu.memory_space<vmem>>, vector<16x32xf32>
    %c0_9 = arith.constant 0 : index
    %c0_10 = arith.constant 0 : index
    %19 = vector.load %arg5[%c0_9, %c0_10] : memref<64x32xf32, #tpu.memory_space<vmem>>, vector<64x32xf32>
    %cst_11 = arith.constant dense<0.000000e+00> : vector<16x32xf32>
    %20 = tpu.matmul %17, %19, %cst_11 {dimension_numbers = #tpu.dot_dimension_numbers<[1], [0], [0], [1], [0, 0, 1, 1], [], []>} : vector<16x64xf32>, vector<64x32xf32>, vector<16x32xf32> -> vector<16x32xf32>
    %21 = arith.addf %18, %20 : vector<16x32xf32>
    %c0_12 = arith.constant 0 : index
    %c0_13 = arith.constant 0 : index
    %22 = vector.load %arg8[%c0_12, %c0_13] : memref<16x32xf32, #tpu.memory_space<vmem>>, vector<16x32xf32>
    tpu.vector_store %arg8[%c0_12, %c0_13], %21 {strides = array<i32>} : memref<16x32xf32, #tpu.memory_space<vmem>>, vector<16x32xf32>,
    %c0_i32_14 = arith.constant 0 : i32
    %23 = arith.cmpi eq, %arg1, %c0_i32_14 : i32
    %24 = arith.extui %23 : i1 to i32
    %c0_i32_15 = arith.constant 0 : i32
    %25 = arith.cmpi ne, %24, %c0_i32_15 : i32
    scf.if %25 {
      %c0_16 = arith.constant 0 : index
      %c0_17 = arith.constant 0 : index
      %26 = vector.load %arg8[%c0_16, %c0_17] : memref<16x32xf32, #tpu.memory_space<vmem>>, vector<16x32xf32>
      %c0_18 = arith.constant 0 : index
      %c0_19 = arith.constant 0 : index
      %27 = vector.load %arg6[%c0_18, %c0_19] : memref<1x32xf32, #tpu.memory_space<vmem>>, vector<1x32xf32>
      %28 = vector.broadcast %27 : vector<1x32xf32> to vector<16x32xf32>
      %29 = arith.addf %26, %28 : vector<16x32xf32>
      %c0_20 = arith.constant 0 : index
      %c0_21 = arith.constant 0 : index
      %30 = vector.load %arg7[%c0_20, %c0_21] : memref<16x32xf32, #tpu.memory_space<vmem>>, vector<16x32xf32>
      tpu.vector_store %arg7[%c0_20, %c0_21], %29 {strides = array<i32>} : memref<16x32xf32, #tpu.memory_space<vmem>>, vector<16x32xf32>,
    } else {
    }
    return
  }
  func.func @transform_0(%arg0: i32, %arg1: i32) -> (i32, i32) {
    %c0_i32 = arith.constant 0 : i32
    %c0_i32_0 = arith.constant 0 : i32
    return %arg0, %c0_i32 : i32, i32
  }
  func.func @transform_1(%arg0: i32, %arg1: i32) -> (i32, i32) {
    %c0_i32 = arith.constant 0 : i32
    %c0_i32_0 = arith.constant 0 : i32
    return %c0_i32, %arg1 : i32, i32
  }
  func.func @transform_2(%arg0: i32, %arg1: i32) -> (i32, i32) {
    %c0_i32 = arith.constant 0 : i32
    %c0_i32_0 = arith.constant 0 : i32
    return %c0_i32, %arg1 : i32, i32
  }
  func.func @transform_3(%arg0: i32, %arg1: i32) -> (i32, i32) {
    %c0_i32 = arith.constant 0 : i32
    %c0_i32_0 = arith.constant 0 : i32
    return %arg1, %c0_i32 : i32, i32
  }
  func.func @transform_4(%arg0: i32, %arg1: i32) -> (i32, i32) {
    %c0_i32 = arith.constant 0 : i32
    %c0_i32_0 = arith.constant 0 : i32
    %c0_i32_1 = arith.constant 0 : i32
    return %c0_i32, %c0_i32_0 : i32, i32
  }
  func.func @transform_5(%arg0: i32, %arg1: i32) -> (i32, i32) {
    %c0_i32 = arith.constant 0 : i32
    %c0_i32_0 = arith.constant 0 : i32
    return %arg0, %c0_i32 : i32, i32
  }
}

</mosaic_0001>

<llo_original>
// kernel: tpu_custom_call.1
$region0: #{tpu_custom_call.1}
  #allocation0 [shape = 'u32[]', space=smem, size = 0x4, offset = 0x4, fixed_abs, tag = 'smem constant byte address 0x4 - core index']
  #allocation1 [shape = 'u32[144,128]{1,0:T(1,128)}', space=vmem, size = 0x12000, scoped, tag = 'internal scratch']
  #allocation2 [shape = 'f32[16,32]{1,0:T(8,128)}', space=vmem, size = 0x2000, scoped, tag = 'scratch operand']
  %s0 = inlined_call_operand.vmem [shape: f32[16,32], index: 0, kind: input, shape index: {}]
  %s1 = inlined_call_operand.vmem [shape: f32[32,128], index: 1, kind: input, shape index: {}]
  %s2 = inlined_call_operand.vmem [shape: f32[1,128], index: 2, kind: input, shape index: {}]
  %s3 = inlined_call_operand.vmem [shape: f32[64,32], index: 3, kind: input, shape index: {}]
  %s4 = inlined_call_operand.vmem [shape: f32[1,32], index: 4, kind: input, shape index: {}]
  %s5 = inlined_call_operand.hbm [shape: f32[16,32], index: 5, kind: output, shape index: {}]
  %s6 = sld [smem:[#allocation0]]
  $region38: #{tpu_custom_call.1} parent=0
    _
  %s8 = ssub.s32 1, %s6
  %s9 = scalar_select 0, %s8, %s6
  $region1: #{tpu_custom_call.1} parent=0
    #allocation3 [shape = 'u8[8192]{0}', space=vmem, size = 0x2000, scoped, tag = 'output window, operand 0, single buffered']
    #allocation4 [shape = 's32[1]{0}', space=sflag, size = 0x4, scoped, tag = 'scoped memory for tpu_custom_call.1']
    %10 = vsyncpa [#allocation4], 0
    // Predicated region
    $region2: #{tpu_custom_call.1} parent=1 // pred_check
      _
    $region3: #{tpu_custom_call.1} parent=1 // pred_check_branch
      %12 = sbr.rel (0) target = $region5
    $region4: #{tpu_custom_call.1} parent=1 // pred_region
      _
    $region5: #{tpu_custom_call.1} parent=1 // pred_fallthru
      _
    // Predicated region
    $region6: #{tpu_custom_call.1} parent=1 // pred_check
      _
    $region7: #{tpu_custom_call.1} parent=1 // pred_check_branch
      %14 = sbr.rel (0) target = $region9
    $region8: #{tpu_custom_call.1} parent=1 // pred_region
      _
    $region9: #{tpu_custom_call.1} parent=1 // pred_fallthru
      _
    // Predicated region
    $region10: #{tpu_custom_call.1} parent=1 // pred_check
      _
    $region11: #{tpu_custom_call.1} parent=1 // pred_check_branch
      %16 = sbr.rel (0) target = $region13
    $region12: #{tpu_custom_call.1} parent=1 // pred_region
      _
    $region13: #{tpu_custom_call.1} parent=1 // pred_fallthru
      _
    // Predicated region
    $region14: #{tpu_custom_call.1} parent=1 // pred_check
      _
    $region15: #{tpu_custom_call.1} parent=1 // pred_check_branch
      %18 = sbr.rel (0) target = $region17
    $region16: #{tpu_custom_call.1} parent=1 // pred_region
      _
    $region17: #{tpu_custom_call.1} parent=1 // pred_fallthru
      _
    // Predicated region
    $region18: #{tpu_custom_call.1} parent=1 // pred_check
      _
    $region19: #{tpu_custom_call.1} parent=1 // pred_check_branch
      %20 = sbr.rel (0) target = $region21
    $region20: #{tpu_custom_call.1} parent=1 // pred_region
      _
    $region21: #{tpu_custom_call.1} parent=1 // pred_fallthru
      _
    %p21 = scmp.eq.s32.totalorder 0, 0
    // Predicated region
    $region22: #{tpu_custom_call.1} parent=1 // pred_check
      %p22 = pneg %p21
    $region23: #{tpu_custom_call.1} parent=1 // pred_check_branch
      %24 = sbr.rel (%p22) target = $region25
    $region24: #{tpu_custom_call.1} parent=1 // pred_region
      %vm25 = vcmask 261120
      %26 = vst.msk [vmem:[#allocation2] sm:$0xff] %vm25, 0.0
      %27 = vst.msk [vmem:[#allocation2 + $0x8] sm:$0xff] %vm25, 0.0
    $region25: #{tpu_custom_call.1} parent=1 // pred_fallthru
      _
    %v28 = vld [vmem:[%s0] sm:$0xff]
    %v29 = vld [vmem:[%s0 + $0x8] sm:$0xff]
    %v30 = vld [vmem:[%s1] sm:$0xff]
    %v31 = vld [vmem:[%s1 + $0x8] sm:$0xff]
    %v32 = vld [vmem:[%s1 + $0x10] sm:$0xff]
    %v33 = vld [vmem:[%s1 + $0x18] sm:$0xff]
    %v34 = vld [vmem:[%s2] sm:$0x1]
    %v36 = vlaneseq
    %v37 = vshrl.u32 %v36, 7
    %v38 = vsub.s32 0, %v37
    %v39 = vrot.slane %v34, %v38
    %vm41 = vcmask 261120
    %v43 = vsel %vm41, %v28, 0
    %v46 = vsel %vm41, %v29, 0
    %48 = vmatprep.subr.mxu0 0.0
    %49 = vmatpush1.msra.mxu0 %v30
    %50 = vmatprep.subr.mxu0 0.0
    %51 = vmatpush1.msra.mxu0 %v31
    %52 = vmatprep.subr.mxu0 0.0
    %53 = vmatpush1.msra.mxu0 %v32
    %54 = vmatprep.subr.mxu0 0.0
    %55 = vmatpush1.msra.mxu0 %v33
    %56 = vmatprep.subr.mxu0 0.0
    %57 = vmatpush1.msra.mxu0 0.0
    %58 = vmatprep.subr.mxu0 0.0
    %59 = vmatpush1.msra.mxu0 0.0
    %60 = vmatprep.subr.mxu0 0.0
    %61 = vmatpush1.msra.mxu0 0.0
    %62 = vmatprep.subr.mxu0 0.0
    %63 = vmatpush1.msra.mxu0 0.0
    %64 = vmatprep.subr.mxu0 0.0
    %65 = vmatpush1.msra.mxu0 0.0
    %66 = vmatprep.subr.mxu0 0.0
    %67 = vmatpush1.msra.mxu0 0.0
    %68 = vmatprep.subr.mxu0 0.0
    %69 = vmatpush1.msra.mxu0 0.0
    %70 = vmatprep.subr.mxu0 0.0
    %71 = vmatpush1.msra.mxu0 0.0
    %72 = vmatprep.subr.mxu0 0.0
    %73 = vmatpush1.msra.mxu0 0.0
    %74 = vmatprep.subr.mxu0 0.0
    %75 = vmatpush1.msra.mxu0 0.0
    %76 = vmatprep.subr.mxu0 0.0
    %77 = vmatpush1.msra.mxu0 0.0
    %78 = vmatprep.subr.mxu0 0.0
    %79 = vmatpush1.msra.mxu0 0.0
    %80 = vmatprep.subr.mxu0 0.0
    %81 = vmatpush1.msra.mxu0 0.0
    %82 = vmatprep.subr.mxu0 0.0
    %83 = vmatpush1.msra.mxu0 0.0
    %84 = vmatprep.subr.mxu0 0.0
    %85 = vmatpush1.msra.mxu0 0.0
    %86 = vmatprep.subr.mxu0 0.0
    %87 = vmatpush1.msra.mxu0 0.0
    %88 = vmatprep.subr.mxu0 0.0
    %89 = vmatpush1.msra.mxu0 0.0
    %90 = vmatprep.subr.mxu0 0.0
    %91 = vmatpush1.msra.mxu0 0.0
    %92 = vmatprep.subr.mxu0 0.0
    %93 = vmatpush1.msra.mxu0 0.0
    %94 = vmatprep.subr.mxu0 0.0
    %95 = vmatpush1.msra.mxu0 0.0
    %96 = vmatprep.subr.mxu0 0.0
    %97 = vmatpush1.msra.mxu0 0.0
    %98 = vmatprep.subr.mxu0 0.0
    %99 = vmatpush1.msra.mxu0 0.0
    %100 = vmatprep.subr.mxu0 0.0
    %101 = vmatpush1.msra.mxu0 0.0
    %102 = vmatprep.subr.mxu0 0.0
    %103 = vmatpush1.msra.mxu0 0.0
    %104 = vmatprep.subr.mxu0 0.0
    %105 = vmatpush1.msra.mxu0 0.0
    %106 = vmatprep.subr.mxu0 0.0
    %107 = vmatpush1.msra.mxu0 0.0
    %108 = vmatprep.subr.mxu0 0.0
    %109 = vmatpush1.msra.mxu0 0.0
    %110 = vmatprep.subr.mxu0 0.0
    %111 = vmatpush1.msra.mxu0 0.0
    %112 = vmatprep.mubr.f32.mxu0 0.0
    %113 = vmatmul.mubr.f32.gmra.mrb[0].mxu0 %v43
    %v114 = vpop.f32.mrb[0].mxu0
    %v115 = vadd.f32 %v39, %v114
    %v116 = vpop.f32.mrb[0].mxu0
    %117 = vmatprep.mubr.f32.mxu0 0.0
    %118 = vmatmul.mubr.f32.gmra.mrb[0].mxu0 %v46
    %v119 = vpop.f32.mrb[0].mxu0
    %v120 = vadd.f32 %v39, %v119
    %v121 = vpop.f32.mrb[0].mxu0
    %122 = vdwg.mxu0
    %v123 = vxor.u32 %v115, 2147483648
    %v124 = vxor.u32 %v120, 2147483648
    %v125 = vmul.f32 %v123, 1.442695
    %v126 = vpow.pop %v125
    %v127 = vmul.f32 %v124, 1.442695
    %v128 = vpow.pop %v127
    %v129 = vadd.f32 %v126, 1.0
    %v130 = vadd.f32 %v128, 1.0
    %v131 = vrcp.pop %v129
    %v132 = vmul.f32 1.0, %v131
    %v133 = vrcp.pop %v130
    %v134 = vmul.f32 1.0, %v133
    %v135 = vmul.f32 %v115, %v132
    %v136 = vmul.f32 %v120, %v134
    %139 = vrot.lane.b32.xlu0 %v115, 64
    %v140 = vpop.permute.xlu0 %139
    %141 = vrot.lane.b32.xlu0 %v120, 64
    %v142 = vpop.permute.xlu0 %141
    %v145 = vmul.f32 %v135, %v140
    %v146 = vmul.f32 %v136, %v142
    %v147 = vld [vmem:[#allocation2] sm:$0xff]
    %v148 = vld [vmem:[#allocation2 + $0x8] sm:$0xff]
    %v149 = vld [vmem:[%s3] sm:$0xff]
    %v150 = vld [vmem:[%s3 + $0x8] sm:$0xff]
    %v151 = vld [vmem:[%s3 + $0x10] sm:$0xff]
    %v152 = vld [vmem:[%s3 + $0x18] sm:$0xff]
    %v153 = vld [vmem:[%s3 + $0x20] sm:$0xff]
    %v154 = vld [vmem:[%s3 + $0x28] sm:$0xff]
    %v155 = vld [vmem:[%s3 + $0x30] sm:$0xff]
    %v156 = vld [vmem:[%s3 + $0x38] sm:$0xff]
    %vm157 = vcmask 523264
    %v159 = vsel %vm157, %v145, 0
    %v162 = vsel %vm157, %v146, 0
    %164 = vmatprep.subr.mxu0 0.0
    %165 = vmatpush1.msra.mxu0 %v149
    %166 = vmatprep.subr.mxu0 0.0
    %167 = vmatpush1.msra.mxu0 %v150
    %168 = vmatprep.subr.mxu0 0.0
    %169 = vmatpush1.msra.mxu0 %v151
    %170 = vmatprep.subr.mxu0 0.0
    %171 = vmatpush1.msra.mxu0 %v152
    %172 = vmatprep.subr.mxu0 0.0
    %173 = vmatpush1.msra.mxu0 %v153
    %174 = vmatprep.subr.mxu0 0.0
    %175 = vmatpush1.msra.mxu0 %v154
    %176 = vmatprep.subr.mxu0 0.0
    %177 = vmatpush1.msra.mxu0 %v155
    %178 = vmatprep.subr.mxu0 0.0
    %179 = vmatpush1.msra.mxu0 %v156
    %180 = vmatprep.subr.mxu0 0.0
    %181 = vmatpush1.msra.mxu0 0.0
    %182 = vmatprep.subr.mxu0 0.0
    %183 = vmatpush1.msra.mxu0 0.0
    %184 = vmatprep.subr.mxu0 0.0
    %185 = vmatpush1.msra.mxu0 0.0
    %186 = vmatprep.subr.mxu0 0.0
    %187 = vmatpush1.msra.mxu0 0.0
    %188 = vmatprep.subr.mxu0 0.0
    %189 = vmatpush1.msra.mxu0 0.0
    %190 = vmatprep.subr.mxu0 0.0
    %191 = vmatpush1.msra.mxu0 0.0
    %192 = vmatprep.subr.mxu0 0.0
    %193 = vmatpush1.msra.mxu0 0.0
    %194 = vmatprep.subr.mxu0 0.0
    %195 = vmatpush1.msra.mxu0 0.0
    %196 = vmatprep.subr.mxu0 0.0
    %197 = vmatpush1.msra.mxu0 0.0
    %198 = vmatprep.subr.mxu0 0.0
    %199 = vmatpush1.msra.mxu0 0.0
    %200 = vmatprep.subr.mxu0 0.0
    %201 = vmatpush1.msra.mxu0 0.0
    %202 = vmatprep.subr.mxu0 0.0
    %203 = vmatpush1.msra.mxu0 0.0
    %204 = vmatprep.subr.mxu0 0.0
    %205 = vmatpush1.msra.mxu0 0.0
    %206 = vmatprep.subr.mxu0 0.0
    %207 = vmatpush1.msra.mxu0 0.0
    %208 = vmatprep.subr.mxu0 0.0
    %209 = vmatpush1.msra.mxu0 0.0
    %210 = vmatprep.subr.mxu0 0.0
    %211 = vmatpush1.msra.mxu0 0.0
    %212 = vmatprep.subr.mxu0 0.0
    %213 = vmatpush1.msra.mxu0 0.0
    %214 = vmatprep.subr.mxu0 0.0
    %215 = vmatpush1.msra.mxu0 0.0
    %216 = vmatprep.subr.mxu0 0.0
    %217 = vmatpush1.msra.mxu0 0.0
    %218 = vmatprep.subr.mxu0 0.0
    %219 = vmatpush1.msra.mxu0 0.0
    %220 = vmatprep.subr.mxu0 0.0
    %221 = vmatpush1.msra.mxu0 0.0
    %222 = vmatprep.subr.mxu0 0.0
    %223 = vmatpush1.msra.mxu0 0.0
    %224 = vmatprep.subr.mxu0 0.0
    %225 = vmatpush1.msra.mxu0 0.0
    %226 = vmatprep.subr.mxu0 0.0
    %227 = vmatpush1.msra.mxu0 0.0
    %228 = vmatprep.mubr.f32.mxu0 0.0
    %229 = vmatmul.mubr.f32.gmra.mrb[0].mxu0 %v159
    %v230 = vpop.f32.mrb[0].mxu0
    %v231 = vadd.f32 0.0, %v230
    %v232 = vpop.f32.mrb[0].mxu0
    %233 = vmatprep.mubr.f32.mxu0 0.0
    %234 = vmatmul.mubr.f32.gmra.mrb[0].mxu0 %v162
    %v235 = vpop.f32.mrb[0].mxu0
    %v236 = vadd.f32 0.0, %v235
    %v237 = vpop.f32.mrb[0].mxu0
    %238 = vdwg.mxu0
    %v239 = vadd.f32 %v147, %v231
    %v240 = vadd.f32 %v148, %v236
    %241 = vst.msk [vmem:[#allocation2] sm:$0xff] %vm41, %v239
    %242 = vst.msk [vmem:[#allocation2 + $0x8] sm:$0xff] %vm41, %v240
    // Predicated region
    $region26: #{tpu_custom_call.1} parent=1 // pred_check
      %p243 = pneg %p21
    $region27: #{tpu_custom_call.1} parent=1 // pred_check_branch
      %245 = sbr.rel (%p243) target = $region29
    $region28: #{tpu_custom_call.1} parent=1 // pred_region
      %v246 = vld [vmem:[#allocation2] sm:$0xff]
      %v247 = vld [vmem:[#allocation2 + $0x8] sm:$0xff]
      %v248 = vld [vmem:[%s4] sm:$0x1]
      %v250 = vlaneseq
      %v251 = vshrl.u32 %v250, 7
      %v252 = vsub.s32 0, %v251
      %v253 = vrot.slane %v248, %v252
      %v255 = vadd.f32 %v246, %v253
      %v256 = vadd.f32 %v247, %v253
      %257 = vst.msk [vmem:[#allocation3] sm:$0xff] %vm41, %v255
      %258 = vst.msk [vmem:[#allocation3 + $0x8] sm:$0xff] %vm41, %v256
    $region29: #{tpu_custom_call.1} parent=1 // pred_fallthru
      _
    // Predicated region
    $region30: #{tpu_custom_call.1} parent=1 // pred_check
      _
    $region31: #{tpu_custom_call.1} parent=1 // pred_check_branch
      %260 = sbr.rel (0) target = $region33
    $region32: #{tpu_custom_call.1} parent=1 // pred_region
      %s262 = ssub.s32 256, 256
      %263 = vsyncadd [#allocation4], %s262
      %s264 = sshll.u32 [#allocation3], 4
      %s265 = int_to_ptr.vmem [resolvable:$true] %s264
      %270 = dma.vmem_to_hbm [thread:$0]  %s265, 256, %s5, [#allocation4], 128, 128, 8
    $region33: #{tpu_custom_call.1} parent=1 // pred_fallthru
      _
    // Predicated region
    $region34: #{tpu_custom_call.1} parent=1 // pred_check
      _
    $region35: #{tpu_custom_call.1} parent=1 // pred_check_branch
      %272 = sbr.rel (0) target = $region37
    $region36: #{tpu_custom_call.1} parent=1 // pred_region
      %273 = dma.done [#allocation4], 256
    $region37: #{tpu_custom_call.1} parent=1 // pred_fallthru
      _
    %274 = vsyncpa [#allocation4], 1

</llo_original>
